<compile_context>
chip_gen: v6e
topology: v6e:2x2x1
jax: 0.10.0
libtpu: 0.0.40
codegen_flags: <defaults>
</compile_context>

<pallas_src>
import functools

import jax
import jax.numpy as jnp
from jax import lax
from jax.experimental import pallas as pl
from jax.experimental.pallas import tpu as pltpu


# ----------------------------- generation-aware config ---------------------

_TPU_CFG = None


def _tpu_config():
    """Tile sizes / scoped-VMEM limit derived from the running chip."""
    global _TPU_CFG
    if _TPU_CFG is not None:
        return _TPU_CFG
    vmem_bytes = 64 * 1024 * 1024            # conservative default (v7x per-TC)
    try:
        info = pltpu.get_tpu_info()
        vmem_bytes = int(getattr(info, "vmem_capacity_bytes", vmem_bytes))
    except Exception:
        pass
    vmem_limit = min(96 * 1024 * 1024, (vmem_bytes * 3) // 4)
    if vmem_bytes >= 100 * 1024 * 1024:      # v5e / v6e: 128 MiB physical VMEM
        _TPU_CFG = dict(vmem_limit=vmem_limit, q_tile=512, kv_tile=512,
                        row_tile=1024, k_tile=2048)
    else:                                     # v7x: 64 MiB physical VMEM
        _TPU_CFG = dict(vmem_limit=vmem_limit, q_tile=256, kv_tile=256,
                        row_tile=512, k_tile=2048)
    return _TPU_CFG


# ----------------------------- helpers ------------------------------------

def _round_up(n, m):
    return ((n + m - 1) // m) * m


def _plan_tokens(seq, tile_target, align):
    """Return (tile, padded_len).  Pads instead of hunting for divisors so the
    tile never degenerates below min(tile_target, padded_len)."""
    seq_a = _round_up(seq, align)
    if seq_a <= tile_target:
        return seq_a, seq_a
    # tile_target is a multiple of `align` by construction.
    return tile_target, _round_up(seq, tile_target)


def _pad_tokens_to(t2d, batch, seq, seq_p, feat):
    """Zero-pad the per-batch token count of a (batch*seq, feat) array."""
    if seq_p == seq:
        return t2d
    t = t2d.reshape(batch, seq, feat)
    t = jnp.pad(t, ((0, 0), (0, seq_p - seq), (0, 0)))
    return t.reshape(batch * seq_p, feat)


# ----------------------------- fused linear kernels ------------------------

def _split_refs(refs, n_out, bias_flags):
    x_ref = refs[0]
    w_refs, b_refs = [], []
    pos = 1
    for i in range(n_out):
        w_refs.append(refs[pos]); pos += 1
        if bias_flags[i]:
            b_refs.append(refs[pos]); pos += 1
        else:
            b_refs.append(None)
    return x_ref, w_refs, b_refs, pos


def _fused_linear_direct_kernel(*refs, n_out, bias_flags):
    """Untiled-K path (n_k == 1): out_i = x @ w_i (+ b_i), no scratch, bias
    fused into the single lane-dense store.  x tile is read/cast once."""
    x_ref, w_refs, b_refs, pos = _split_refs(refs, n_out, bias_flags)
    out_refs = refs[pos:pos + n_out]

    xv = x_ref[...].astype(jnp.bfloat16)          # read activation tile once
    for i in range(n_out):
        r = jnp.dot(xv, w_refs[i][...].astype(jnp.bfloat16),
                    preferred_element_type=jnp.float32)
        if b_refs[i] is not None:
            r = r + b_refs[i][...].astype(jnp.float32)
        out_refs[i][...] = r.astype(out_refs[i].dtype)


def _fused_linear_ktiled_kernel(*refs, n_out, bias_flags):
    """K-tiled fallback (large din): accumulate in f32 VMEM scratch."""
    k_idx = pl.program_id(1)
    n_k = pl.num_programs(1)
    x_ref, w_refs, b_refs, pos = _split_refs(refs, n_out, bias_flags)
    out_refs = refs[pos:pos + n_out]
    acc_refs = refs[pos + n_out:]

    @pl.when(k_idx == 0)
    def _():
        for acc in acc_refs:
            acc[...] = jnp.zeros_like(acc)

    xv = x_ref[...].astype(jnp.bfloat16)
    for i in range(n_out):
        acc_refs[i][...] += jnp.dot(xv, w_refs[i][...].astype(jnp.bfloat16),
                                    preferred_element_type=jnp.float32)

    @pl.when(k_idx == n_k - 1)
    def _():
        for i in range(n_out):
            r = acc_refs[i][...]
            if b_refs[i] is not None:
                r = r + b_refs[i][...].astype(jnp.float32)
            out_refs[i][...] = r.astype(out_refs[i].dtype)


def pallas_fused_linear(x2d, layers, *, out_dtype=None, cfg=None):
    """x2d: (rows, din); layers: list of (w (din, dout_i), b (dout_i,)|None).
    Returns a list of (rows, dout_i) outputs.  All matmuls share the read of x;
    with untiled K the weights stay VMEM-resident for the whole grid."""
    cfg = cfg or _tpu_config()
    rows, din = x2d.shape
    out_dtype = x2d.dtype if out_dtype is None else out_dtype
    n_out = len(layers)
    bias_flags = tuple(b is not None for (_, b) in layers)
    douts = [w.shape[1] for (w, _) in layers]

    tm, rows_p = _plan_tokens(rows, cfg["row_tile"], 8)
    if rows_p != rows:
        x2d = jnp.pad(x2d, ((0, rows_p - rows), (0, 0)))

    k_tile = cfg["k_tile"]
    if din > k_tile and din % k_tile == 0:
        tk, n_k = k_tile, din // k_tile
    else:
        tk, n_k = din, 1                       # common case: weights resident

    args = [x2d]
    if n_k == 1:
        grid = (rows_p // tm,)
        in_specs = [pl.BlockSpec((tm, din), lambda r: (r, 0))]
        for (w, bias), dout in zip(layers, douts):
            in_specs.append(pl.BlockSpec((din, dout), lambda r: (0, 0)))
            args.append(w)
            if bias is not None:
                in_specs.append(pl.BlockSpec((1, dout), lambda r: (0, 0)))
                args.append(bias.reshape(1, dout))
        out_specs = tuple(pl.BlockSpec((tm, d_), lambda r: (r, 0)) for d_ in douts)
        scratch = ()
        kern = functools.partial(_fused_linear_direct_kernel,
                                 n_out=n_out, bias_flags=bias_flags)
        dims = ("parallel",)
    else:
        grid = (rows_p // tm, n_k)
        in_specs = [pl.BlockSpec((tm, tk), lambda r, k_: (r, k_))]
        for (w, bias), dout in zip(layers, douts):
            in_specs.append(pl.BlockSpec((tk, dout), lambda r, k_: (k_, 0)))
            args.append(w)
            if bias is not None:
                in_specs.append(pl.BlockSpec((1, dout), lambda r, k_: (0, 0)))
                args.append(bias.reshape(1, dout))
        out_specs = tuple(pl.BlockSpec((tm, d_), lambda r, k_: (r, 0)) for d_ in douts)
        scratch = tuple(pltpu.VMEM((tm, d_), jnp.float32) for d_ in douts)
        kern = functools.partial(_fused_linear_ktiled_kernel,
                                 n_out=n_out, bias_flags=bias_flags)
        dims = ("parallel", "arbitrary")

    out_shapes = tuple(jax.ShapeDtypeStruct((rows_p, d_), out_dtype) for d_ in douts)
    outs = pl.pallas_call(
        kern,
        out_shape=out_shapes,
        grid_spec=pltpu.PrefetchScalarGridSpec(
            num_scalar_prefetch=0,
            grid=grid,
            in_specs=in_specs,
            out_specs=out_specs,
            scratch_shapes=scratch),
        compiler_params=pltpu.CompilerParams(
            dimension_semantics=dims,
            vmem_limit_bytes=cfg["vmem_limit"]),
    )(*args)
    if not isinstance(outs, (list, tuple)):
        outs = (outs,)
    if rows_p != rows:
        outs = tuple(o[:rows] for o in outs)
    return list(outs)


# ----------------------------- flash attention kernel ----------------------

def _flash_attn_kernel(q_ref, k_ref, v_ref, o_ref, m_sc, l_sc, acc_sc, *,
                       heads, dim_head, kv_valid, kv_tile, kv_padded):
    """Online-softmax attention over kv tiles.

    q/k/v/o tiles stay in (tokens, heads*dim_head) layout (no XLA transposes);
    the running output accumulator is (heads, TQ, dim_head) so the per-kv-step
    update is a leading-index slab RMW instead of lane-offset masked slices.
    bf16 MXU operands, f32 accumulation, f32 softmax stats.
    """
    ki = pl.program_id(2)
    n_kv = pl.num_programs(2)

    @pl.when(ki == 0)
    def _():
        m_sc[...] = jnp.full_like(m_sc, -jnp.inf)
        l_sc[...] = jnp.zeros_like(l_sc)
        acc_sc[...] = jnp.zeros_like(acc_sc)

    q = q_ref[...]                         # (TQ, H*D) bf16, scale pre-folded into w_q
    k = k_ref[...]                         # (TK, H*D) bf16
    v = v_ref[...]                         # (TK, H*D) bf16

    if kv_padded:
        # Additive (1, TK) bias built once per grid step, shared by all heads.
        col = lax.broadcasted_iota(jnp.int32, (1, kv_tile), 1) + ki * kv_tile
        bias = jnp.where(col < kv_valid, 0.0, -1e30).astype(jnp.float32)

    # TODO(synk): per-head matmuls contract only K=dim_head; a batched
    # 'hqd,hkd->hqk' dot (head packing) would feed the 256-wide MXU better.
    for hh in range(heads):
        sl = slice(hh * dim_head, (hh + 1) * dim_head)
        # q k^T via dot_general contracting last dims (no explicit transpose).
        s = lax.dot_general(q[:, sl], k[:, sl], (((1,), (1,)), ((), ())),
                            preferred_element_type=jnp.float32)       # (TQ, TK) f32
        if kv_padded:
            s = s + bias
        m_prev = m_sc[hh]                                              # (TQ, 1) f32
        m_new = jnp.maximum(m_prev, jnp.max(s, axis=-1, keepdims=True))
        alpha = jnp.exp(m_prev - m_new)
        p = jnp.exp(s - m_new)
        l_sc[hh] = alpha * l_sc[hh] + jnp.sum(p, axis=-1, keepdims=True)
        acc_sc[hh] = alpha * acc_sc[hh] + jnp.dot(
            p.astype(jnp.bfloat16), v[:, sl], preferred_element_type=jnp.float32)
        m_sc[hh] = m_new

    @pl.when(ki == n_kv - 1)
    def _():
        # Per-head stores happen only once per q tile (not per kv step).
        for hh in range(heads):
            sl = slice(hh * dim_head, (hh + 1) * dim_head)
            inv = pl.reciprocal(l_sc[hh], approx=True)     # EUP, frees VPU slots
            o_ref[:, sl] = (acc_sc[hh] * inv).astype(o_ref.dtype)


def pallas_flash_attention(q2d, k2d, v2d, *, batch, q_len, kv_len, kv_valid,
                           heads, dim_head, q_tile, kv_tile, vmem_limit):
    """q2d: (batch*q_len, H*D); k2d/v2d: (batch*kv_len, H*D) -> (batch*q_len, H*D).
    Head split/merge is expressed via BlockSpec index maps + static lane slices
    inside the kernel (output already in 'b n (h d)' layout)."""
    hd = heads * dim_head
    nqt = q_len // q_tile
    nkt = kv_len // kv_tile
    grid = (batch, nqt, nkt)

    kern = functools.partial(
        _flash_attn_kernel, heads=heads, dim_head=dim_head,
        kv_valid=kv_valid, kv_tile=kv_tile, kv_padded=(kv_valid != kv_len))

    return pl.pallas_call(
        kern,
        out_shape=jax.ShapeDtypeStruct((batch * q_len, hd), q2d.dtype),
        grid_spec=pltpu.PrefetchScalarGridSpec(
            num_scalar_prefetch=0,
            grid=grid,
            in_specs=[
                pl.BlockSpec((q_tile, hd), lambda b, qi, ki: (b * nqt + qi, 0)),
                pl.BlockSpec((kv_tile, hd), lambda b, qi, ki: (b * nkt + ki, 0)),
                pl.BlockSpec((kv_tile, hd), lambda b, qi, ki: (b * nkt + ki, 0)),
            ],
            out_specs=pl.BlockSpec((q_tile, hd), lambda b, qi, ki: (b * nqt + qi, 0)),
            scratch_shapes=[
                pltpu.VMEM((heads, q_tile, 1), jnp.float32),         # running max
                pltpu.VMEM((heads, q_tile, 1), jnp.float32),         # running sum
                pltpu.VMEM((heads, q_tile, dim_head), jnp.float32),  # running acc
            ]),
        compiler_params=pltpu.CompilerParams(
            dimension_semantics=("parallel", "parallel", "arbitrary"),
            vmem_limit_bytes=vmem_limit),
    )(q2d, k2d, v2d)


# ----------------------------- module --------------------------------------

class CrossAttentionPallas:
    """Mirrors the PyTorch CrossAttention module (dropout=0, prompt_to_prompt=False)."""

    def __init__(self, query_dim, context_dim=None, heads=8, dim_head=64,
                 dropout=0.0, key=None):
        inner_dim = dim_head * heads
        context_dim = query_dim if context_dim is None else context_dim
        self.scale = dim_head ** (-0.5)
        self.heads = heads
        self.dim_head = dim_head
        self.query_dim = query_dim
        self.context_dim = context_dim

        key = jax.random.PRNGKey(42) if key is None else key
        k1, k2, k3, k4, k5 = jax.random.split(key, 5)
        s = 0.02

        def mk(k, shape):
            # Synthetic weights chosen bf16-representable (stored f32 for the
            # reference math) so the bf16 kernel path matches the reference.
            return (s * jax.random.normal(k, shape)).astype(jnp.bfloat16).astype(jnp.float32)

        # Layout (Din, Dout) = W^T of torch Linear.
        self.wq = mk(k1, (query_dim, inner_dim))
        self.wk = mk(k2, (context_dim, inner_dim))
        self.wv = mk(k3, (context_dim, inner_dim))
        self.wo = mk(k4, (inner_dim, query_dim))
        self.bo = mk(k5, (query_dim,))

        # bf16 MXU operands; softmax scale folded into the q projection.
        self.wq_bf16 = (self.wq * self.scale).astype(jnp.bfloat16)
        self.wk_bf16 = self.wk.astype(jnp.bfloat16)
        self.wv_bf16 = self.wv.astype(jnp.bfloat16)
        self.wo_bf16 = self.wo.astype(jnp.bfloat16)

    def __call__(self, x, context=None):
        # x: (B, N, query_dim); context: (B, M, context_dim) or None (self-attn)
        # TODO(synk): optional `mask` (masked_fill with -inf) and prompt_to_prompt
        # sim-chunk paths not wired in; module defaults (mask=None, False) assumed.
        b, n, _ = x.shape
        h, d = self.heads, self.dim_head
        hd = h * d
        cfg = _tpu_config()
        x2d = x.reshape(b * n, self.query_dim)

        if context is None:
            # Self-attention: one fused kernel reads x once, emits q, k and v (bf16).
            q2d, k2d, v2d = pallas_fused_linear(
                x2d, [(self.wq_bf16, None), (self.wk_bf16, None), (self.wv_bf16, None)],
                out_dtype=jnp.bfloat16, cfg=cfg)
            m = n
        else:
            m = context.shape[1]
            c2d = context.reshape(b * m, self.context_dim)
            (q2d,) = pallas_fused_linear(x2d, [(self.wq_bf16, None)],
                                         out_dtype=jnp.bfloat16, cfg=cfg)
            # k and v share the read of context (one fused pallas_call, two outputs).
            k2d, v2d = pallas_fused_linear(
                c2d, [(self.wk_bf16, None), (self.wv_bf16, None)],
                out_dtype=jnp.bfloat16, cfg=cfg)

        # Pad q rows to the q tile (multiple of 8) and kv rows to a multiple of
        # 128 / the kv tile; padded kv columns are masked in-kernel, padded q
        # rows are sliced off below.
        tq, n_p = _plan_tokens(n, cfg["q_tile"], 8)
        tk, m_p = _plan_tokens(m, cfg["kv_tile"], 128)
        q2d = _pad_tokens_to(q2d, b, n, n_p, hd)
        k2d = _pad_tokens_to(k2d, b, m, m_p, hd)
        v2d = _pad_tokens_to(v2d, b, m, m_p, hd)

        out2d = pallas_flash_attention(
            q2d, k2d, v2d, batch=b, q_len=n_p, kv_len=m_p, kv_valid=m,
            heads=h, dim_head=d, q_tile=tq, kv_tile=tk,
            vmem_limit=cfg["vmem_limit"])          # (B*n_p, h*d), 'b n (h d)' layout

        if n_p != n:
            out2d = out2d.reshape(b, n_p, hd)[:, :n, :].reshape(b * n, hd)

        # to_out: Linear(inner_dim, query_dim) + Dropout(0.0) (identity).
        (y2d,) = pallas_fused_linear(out2d, [(self.wo_bf16, self.bo)],
                                     out_dtype=x.dtype, cfg=cfg)
        return y2d.reshape(b, n, self.query_dim)


# ----------------------------- reference (plain JAX, f32) ------------------

def reference_forward(mod, x, context=None):
    b, n, _ = x.shape
    h, d = mod.heads, mod.dim_head
    context = x if context is None else context
    m = context.shape[1]
    q = x @ mod.wq
    k = context @ mod.wk
    v = context @ mod.wv

    def split(t, seq):
        return t.reshape(b, seq, h, d).transpose(0, 2, 1, 3).reshape(b * h, seq, d)

    qh, kh, vh = split(q, n), split(k, m), split(v, m)
    sim = jnp.einsum('bid,bjd->bij', qh, kh) * mod.scale
    attn = jax.nn.softmax(sim.astype(jnp.float32), axis=-1).astype(sim.dtype)
    out = jnp.einsum('bij,bjd->bid', attn, vh)
    out = out.reshape(b, h, n, d).transpose(0, 2, 1, 3).reshape(b, n, h * d)
    return out @ mod.wo + mod.bo


# ----------------------------- main ----------------------------------------

if __name__ == "__main__":
    key = jax.random.PRNGKey(0)
    kx, kc, kp = jax.random.split(key, 3)

    B, N, M = 2, 16, 8
    query_dim, context_dim = 32, 24
    heads, dim_head = 4, 16

    x = jax.random.normal(kx, (B, N, query_dim), dtype=jnp.float32)
    context = jax.random.normal(kc, (B, M, context_dim), dtype=jnp.float32)

    # Cross-attention path.
    mod = CrossAttentionPallas(query_dim, context_dim=context_dim,
                               heads=heads, dim_head=dim_head, key=kp)
    y = jax.block_until_ready(mod(x, context))
    y_ref = reference_forward(mod, x, context)

    # Self-attention path (context=None) exercises the fused q/k/v projection.
    mod_self = CrossAttentionPallas(query_dim, context_dim=None,
                                    heads=heads, dim_head=dim_head, key=kp)
    y_self = jax.block_until_ready(mod_self(x, None))
    y_self_ref = reference_forward(mod_self, x, None)

    assert y.shape == (B, N, query_dim)
    assert y_self.shape == (B, N, query_dim)
    # Tolerance accounts for bf16 MXU operands / bf16 inter-kernel activations
    # and pl.reciprocal(approx=True); weights are bf16-representable so the
    # f32 reference uses the same effective parameters.
    assert jnp.allclose(y, y_ref, atol=3e-3, rtol=3e-3), \
        float(jnp.max(jnp.abs(y - y_ref)))
    assert jnp.allclose(y_self, y_self_ref, atol=3e-3, rtol=3e-3), \
        float(jnp.max(jnp.abs(y_self - y_self_ref)))

    print("KERNEL_OK")
</pallas_src>

<mosaic_0001>
module attributes {stable_mosaic.version = 11 : i64} {
  func.func @_fused_linear_direct_kernel(%arg0: i32, %arg1: memref<32x32xf32, #tpu.memory_space<vmem>>, %arg2: memref<32x64xbf16, #tpu.memory_space<vmem>>, %arg3: memref<32x64xbf16, #tpu.memory_space<vmem>>) attributes {dimension_semantics = [#tpu.dimension_semantics<parallel>], iteration_bounds = array<i64: 1>, scalar_prefetch = 0 : i64, scratch_operands = 0 : i64, tpu.core_type = #tpu.core_type<tc>, window_params = [{transform_indices = @transform_0, window_bounds = array<i64: 32, 32>}, {pipeline_mode = #tpu.pipeline_mode<synchronous>, transform_indices = @transform_1, window_bounds = array<i64: 32, 64>}, {transform_indices = @transform_2, window_bounds = array<i64: 32, 64>}]} {
    %c0 = arith.constant 0 : index
    %c0_0 = arith.constant 0 : index
    %0 = vector.load %arg1[%c0, %c0_0] : memref<32x32xf32, #tpu.memory_space<vmem>>, vector<32x32xf32>
    %1 = arith.truncf %0 : vector<32x32xf32> to vector<32x32xbf16>
    %c0_1 = arith.constant 0 : index
    %c0_2 = arith.constant 0 : index
    %2 = vector.load %arg2[%c0_1, %c0_2] : memref<32x64xbf16, #tpu.memory_space<vmem>>, vector<32x64xbf16>
    %cst = arith.constant dense<0.000000e+00> : vector<32x64xf32>
    %3 = tpu.matmul %1, %2, %cst {dimension_numbers = #tpu.dot_dimension_numbers<[1], [0], [0], [1], [0, 0, 1, 1], [], []>} : vector<32x32xbf16>, vector<32x64xbf16>, vector<32x64xf32> -> vector<32x64xf32>
    %4 = arith.truncf %3 : vector<32x64xf32> to vector<32x64xbf16>
    %c0_3 = arith.constant 0 : index
    %c0_4 = arith.constant 0 : index
    %5 = vector.load %arg3[%c0_3, %c0_4] : memref<32x64xbf16, #tpu.memory_space<vmem>>, vector<32x64xbf16>
    tpu.vector_store %arg3[%c0_3, %c0_4], %4 {strides = array<i32>} : memref<32x64xbf16, #tpu.memory_space<vmem>>, vector<32x64xbf16>,
    return
  }
  func.func @transform_0(%arg0: i32) -> (i32, i32) {
    %c0_i32 = arith.constant 0 : i32
    %c0_i32_0 = arith.constant 0 : i32
    return %arg0, %c0_i32 : i32, i32
  }
  func.func @transform_1(%arg0: i32) -> (i32, i32) {
    %c0_i32 = arith.constant 0 : i32
    %c0_i32_0 = arith.constant 0 : i32
    %c0_i32_1 = arith.constant 0 : i32
    return %c0_i32, %c0_i32_0 : i32, i32
  }
  func.func @transform_2(%arg0: i32) -> (i32, i32) {
    %c0_i32 = arith.constant 0 : i32
    %c0_i32_0 = arith.constant 0 : i32
    return %arg0, %c0_i32 : i32, i32
  }
}

</mosaic_0001>

<llo_original>
// kernel: tpu_custom_call.1
$region0: #{tpu_custom_call.1}
  #allocation0 [shape = 'u32[]', space=smem, size = 0x4, offset = 0x4, fixed_abs, tag = 'smem constant byte address 0x4 - core index']
  #allocation1 [shape = 'u32[144,128]{1,0:T(1,128)}', space=vmem, size = 0x12000, scoped, tag = 'internal scratch']
  %s0 = inlined_call_operand.hbm [shape: f32[32,32], index: 0, kind: input, shape index: {}]
  %s1 = inlined_call_operand.hbm [shape: bf16[32,64], index: 1, kind: input, shape index: {}]
  %s2 = inlined_call_operand.hbm [shape: bf16[32,64], index: 2, kind: output, shape index: {}]
  %s3 = sld [smem:[#allocation0]]
  $region26: #{tpu_custom_call.1} parent=0
    _
  %s5 = ssub.s32 1, %s3
  %s6 = scalar_select 0, %s5, %s3
  $region1: #{tpu_custom_call.1} parent=0
    #allocation2 [shape = 'u8[16384]{0}', space=vmem, size = 0x4000, scoped, tag = 'input window, operand 0, single buffered']
    #allocation3 [shape = 's32[1]{0}', space=sflag, size = 0x4, scoped, tag = 'scoped memory for tpu_custom_call.1']
    #allocation4 [shape = 's32[1]{0}', space=sflag, size = 0x4, scoped, tag = 'scoped memory for tpu_custom_call.1']
    #allocation5 [shape = 'u8[8192]{0}', space=vmem, size = 0x2000, scoped, tag = 'input window, operand 1, single buffered']
    #allocation6 [shape = 's32[1]{0}', space=sflag, size = 0x4, scoped, tag = 'scoped memory for tpu_custom_call.1']
    #allocation7 [shape = 'u8[8192]{0}', space=vmem, size = 0x2000, scoped, tag = 'output window, operand 0, single buffered']
    %7 = vsyncpa [#allocation3], 0
    %8 = vsyncpa [#allocation6], 0
    %9 = vsyncpa [#allocation4], 0
    // Predicated region
    $region2: #{tpu_custom_call.1} parent=1 // pred_check
      _
    $region3: #{tpu_custom_call.1} parent=1 // pred_check_branch
      %11 = sbr.rel (0) target = $region5
    $region4: #{tpu_custom_call.1} parent=1 // pred_region
      %s13 = ssub.s32 512, 512
      %14 = vsyncadd [#allocation3], %s13
      %s15 = sshll.u32 [#allocation2], 4
      %s16 = int_to_ptr.vmem [resolvable:$true] %s15
      %21 = dma.hbm_to_vmem [thread:$0]  %s0, 512, %s16, [#allocation3], 128, 128, 8
    $region5: #{tpu_custom_call.1} parent=1 // pred_fallthru
      _
    // Predicated region
    $region6: #{tpu_custom_call.1} parent=1 // pred_check
      _
    $region7: #{tpu_custom_call.1} parent=1 // pred_check_branch
      %23 = sbr.rel (0) target = $region9
    $region8: #{tpu_custom_call.1} parent=1 // pred_region
      %s25 = ssub.s32 256, 256
      %26 = vsyncadd [#allocation6], %s25
      %s27 = sshll.u32 [#allocation5], 4
      %s28 = int_to_ptr.vmem [resolvable:$true] %s27
      %33 = dma.hbm_to_vmem [thread:$0]  %s1, 256, %s28, [#allocation6], 64, 64, 4
    $region9: #{tpu_custom_call.1} parent=1 // pred_fallthru
      _
    // Predicated region
    $region10: #{tpu_custom_call.1} parent=1 // pred_check
      _
    $region11: #{tpu_custom_call.1} parent=1 // pred_check_branch
      %35 = sbr.rel (0) target = $region13
    $region12: #{tpu_custom_call.1} parent=1 // pred_region
      %36 = dma.done [#allocation3], 512
    $region13: #{tpu_custom_call.1} parent=1 // pred_fallthru
      _
    // Predicated region
    $region14: #{tpu_custom_call.1} parent=1 // pred_check
      _
    $region15: #{tpu_custom_call.1} parent=1 // pred_check_branch
      %38 = sbr.rel (0) target = $region17
    $region16: #{tpu_custom_call.1} parent=1 // pred_region
      %39 = dma.done [#allocation6], 256
    $region17: #{tpu_custom_call.1} parent=1 // pred_fallthru
      _
    %v41 = vld [vmem:[#allocation2] sm:$0xff]
    %v42 = vld [vmem:[#allocation2 + $0x8] sm:$0xff]
    %v43 = vld [vmem:[#allocation2 + $0x10] sm:$0xff]
    %v44 = vld [vmem:[#allocation2 + $0x18] sm:$0xff]
    %v45 = vpack.c.bf16 %v42, %v41
    %v46 = vpack.c.bf16 %v44, %v43
    %v47 = vld [vmem:[#allocation5] sm:$0xf]
    %v48 = vld [vmem:[#allocation5 + $0x4] sm:$0xf]
    %v49 = vld [vmem:[#allocation5 + $0x8] sm:$0xf]
    %v50 = vld [vmem:[#allocation5 + $0xc] sm:$0xf]
    %v55 = vunpack.c.l.b16 %v47
    %v56 = vunpack.c.l.b16 %v48
    %v57 = vunpack.c.l.b16 %v49
    %v58 = vunpack.c.l.b16 %v50
    %v59 = vpack.c.b16 %v56, %v55
    %v60 = vpack.c.b16 %v58, %v57
    %vm63 = vcmask 261120
    %v65 = vsel %vm63, %v45, 0
    %v68 = vsel %vm63, %v46, 0
    %70 = vmatprep.subr.bf16.mxu0 0
    %71 = vmatpush1.bf16.msra.mxu0 0
    %72 = vmatprep.subr.bf16.mxu0 0
    %73 = vmatpush1.bf16.msra.mxu0 0
    %74 = vmatprep.subr.bf16.mxu0 0
    %75 = vmatpush1.bf16.msra.mxu0 0
    %76 = vmatprep.subr.bf16.mxu0 0
    %77 = vmatpush1.bf16.msra.mxu0 0
    %78 = vmatprep.subr.bf16.mxu0 0
    %79 = vmatpush1.bf16.msra.mxu0 0
    %80 = vmatprep.subr.bf16.mxu0 0
    %81 = vmatpush1.bf16.msra.mxu0 0
    %82 = vmatprep.subr.bf16.mxu0 0
    %83 = vmatpush1.bf16.msra.mxu0 %v60
    %84 = vmatprep.subr.bf16.mxu0 0
    %85 = vmatpush1.bf16.msra.mxu0 %v59
    %86 = vmatprep.subr.bf16.mxu0 0
    %87 = vmatpush2.bf16.msra.mxu0 0
    %88 = vmatprep.subr.bf16.mxu0 0
    %89 = vmatpush2.bf16.msra.mxu0 0
    %90 = vmatprep.subr.bf16.mxu0 0
    %91 = vmatpush2.bf16.msra.mxu0 0
    %92 = vmatprep.subr.bf16.mxu0 0
    %93 = vmatpush2.bf16.msra.mxu0 0
    %94 = vmatprep.subr.bf16.mxu0 0
    %95 = vmatpush2.bf16.msra.mxu0 0
    %96 = vmatprep.subr.bf16.mxu0 0
    %97 = vmatpush2.bf16.msra.mxu0 0
    %98 = vmatprep.subr.bf16.mxu0 0
    %99 = vmatpush2.bf16.msra.mxu0 0
    %100 = vmatprep.subr.bf16.mxu0 0
    %101 = vmatpush2.bf16.msra.mxu0 0
    %102 = vmatprep.mubr.bf16.mxu0 0
    %103 = vmatmul.mubr.bf16.gmra.mxu0 %v65
    %v104 = vpop.f32.mrf.mxu0
    %v105 = vadd.f32 0.0, %v104
    %v106 = vpop.f32.mrf.mxu0
    %v107 = vpop.f32.mrf.mxu0
    %v108 = vadd.f32 0.0, %v107
    %v109 = vpop.f32.mrf.mxu0
    %110 = vmatprep.mubr.bf16.mxu0 0
    %111 = vmatmul.mubr.bf16.gmra.mxu0 %v68
    %v112 = vpop.f32.mrf.mxu0
    %v113 = vadd.f32 0.0, %v112
    %v114 = vpop.f32.mrf.mxu0
    %v115 = vpop.f32.mrf.mxu0
    %v116 = vadd.f32 0.0, %v115
    %v117 = vpop.f32.mrf.mxu0
    %118 = vdwg.mxu0
    %v119 = vpack.c.bf16 %v108, %v105
    %v120 = vpack.c.bf16 %v116, %v113
    %v123 = vunpack.c.l.b16 %v119
    %v124 = vunpack.c.h.b16 %v119
    %v125 = vunpack.c.l.b16 %v120
    %v126 = vunpack.c.h.b16 %v120
    %v127 = vpack.c.b16 %v123, %v123
    %v128 = vpack.c.b16 %v124, %v124
    %v129 = vpack.c.b16 %v125, %v125
    %v130 = vpack.c.b16 %v126, %v126
    %vm135 = vcmask 519168
    %136 = vst.msk [vmem:[#allocation7] sm:$0xf] %vm135, %v127
    %137 = vst.msk [vmem:[#allocation7 + $0x4] sm:$0xf] %vm135, %v128
    %138 = vst.msk [vmem:[#allocation7 + $0x8] sm:$0xf] %vm135, %v129
    %139 = vst.msk [vmem:[#allocation7 + $0xc] sm:$0xf] %vm135, %v130
    // Predicated region
    $region18: #{tpu_custom_call.1} parent=1 // pred_check
      _
    $region19: #{tpu_custom_call.1} parent=1 // pred_check_branch
      %141 = sbr.rel (0) target = $region21
    $region20: #{tpu_custom_call.1} parent=1 // pred_region
      %s143 = ssub.s32 256, 256
      %144 = vsyncadd [#allocation4], %s143
      %s145 = sshll.u32 [#allocation7], 4
      %s146 = int_to_ptr.vmem [resolvable:$true] %s145
      %151 = dma.vmem_to_hbm [thread:$0]  %s146, 256, %s2, [#allocation4], 64, 64, 4
    $region21: #{tpu_custom_call.1} parent=1 // pred_fallthru
      _
    // Predicated region
    $region22: #{tpu_custom_call.1} parent=1 // pred_check
      _
    $region23: #{tpu_custom_call.1} parent=1 // pred_check_branch
      %153 = sbr.rel (0) target = $region25
    $region24: #{tpu_custom_call.1} parent=1 // pred_region
      %154 = dma.done [#allocation4], 256
    $region25: #{tpu_custom_call.1} parent=1 // pred_fallthru
      _
    %155 = vsyncpa [#allocation3], 1
    %156 = vsyncpa [#allocation6], 1
    %157 = vsyncpa [#allocation4], 1

</llo_original>
